<compile_context>
chip_gen: v5e
topology: v5e:2x2
jax: 0.10.0
libtpu: 0.0.40
codegen_flags: <defaults>
</compile_context>

<pallas_src>
import math

import jax
import jax.numpy as jnp
import numpy as np
from jax.experimental import pallas as pl
from jax.experimental.pallas import tpu as pltpu

EPS = 1e-6
NMN = 2.0  # the `nmn` scale passed to CustomLoss.__init__
LAYER_WEIGHTS = (0.5, 0.5, 0.75, 0.5, 1.0)

NC = 2            # leading "parallel" grid axis (dual TensorCore on v7x)
TM_CAP = 1024     # max rows (of 128 lanes) per grid step
PAD_LOGIT = -1e4  # sigmoid / softplus of this are exactly 0 in f32


def _round_up(x, k):
    return -(-x // k) * k


def _make_partial_sums_kernel(num_layers, tm, ch):
    """Kernel producing per-core per-lane partial sums.

    Output slab (1, 1+4L, 8, 128) per core:
      idx 0            : sum(t)
      idx 1+4l..4+4l   : sum(bce_l), sum(bce_l*t), sum(sigmoid_l), sum(sigmoid_l*t)
    """
    n_chunks = tm // ch
    groups = ch // 8

    def fold(v):                       # (CH, 128) -> (8, 128), pure VPU adds
        if groups == 1:
            return v
        return jnp.sum(v.reshape(groups, 8, 128), axis=0)

    def kernel(*refs):
        pred_refs = refs[:num_layers]
        t_ref = refs[num_layers]
        out_ref = refs[num_layers + 1]   # (1, 1+4L, 8, 128) f32, VMEM-resident acc

        i = pl.program_id(1)

        @pl.when(i == 0)
        def _init():
            out_ref[...] = jnp.zeros_like(out_ref)

        @pl.loop(0, n_chunks)
        def _chunk(j):
            r0 = pl.multiple_of(j * ch, ch)
            t = t_ref[pl.ds(r0, ch), :].astype(jnp.float32)   # targets in {0,1}
            out_ref[0, 0] += fold(t)
            for l in range(num_layers):
                x = pred_refs[l][pl.ds(r0, ch), :].astype(jnp.float32)
                e = jnp.exp(-jnp.abs(x))                   # shared by BCE & sigmoid
                one_pe = 1.0 + e
                inv = pl.reciprocal(one_pe, approx=True)   # EUP vrcp (near free)
                p = jnp.where(x >= 0.0, 1.0, e) * inv      # sigmoid(x)
                # BCE with logits (== BCE on sigmoid(x), no clip saturation)
                bce = jnp.maximum(x, 0.0) - x * t + jnp.log(one_pe)
                base = 1 + 4 * l
                out_ref[0, base + 0] += fold(bce)
                out_ref[0, base + 1] += fold(bce * t)
                out_ref[0, base + 2] += fold(p)
                out_ref[0, base + 3] += fold(p * t)

    return kernel


def custom_loss(predict_array, target, nmn=NMN, layer_weights=LAYER_WEIGHTS):
    """predict_array: list of 5 logit arrays [B,C,H,W]; target [B,C,H,W] in {0,1}."""
    num_layers = len(predict_array)
    assert num_layers == len(layer_weights)
    n = int(target.size)

    # ---- tiling: lane-dense (m_pad, 128) slabs, padded to NC*tiles*tm rows ----
    m = -(-n // 128)                                # rows of 128 lanes (ceil)
    rows_per_core = -(-m // NC)
    tm = min(TM_CAP, _round_up(max(rows_per_core, 8), 8))
    ch = math.gcd(tm, 64)                           # chunk rows: divides tm, mult of 8
    tiles_per_core = -(-m // (NC * tm))
    m_pad = NC * tiles_per_core * tm
    n_pad = m_pad * 128

    def prep(a, pad_value):
        flat = a.reshape(-1)
        if n_pad > n:
            flat = jnp.pad(flat, (0, n_pad - n), constant_values=pad_value)
        return flat.reshape(m_pad, 128)

    preds2d = [prep(p, PAD_LOGIT) for p in predict_array]   # keep 5 separate inputs
    tgt2d = prep(target, 0.0)

    kernel = _make_partial_sums_kernel(num_layers, tm, ch)
    n_stats = 1 + 4 * num_layers

    tile_spec = pl.BlockSpec((tm, 128), lambda c, i: (c * tiles_per_core + i, 0))
    partial = pl.pallas_call(
        kernel,
        out_shape=jax.ShapeDtypeStruct((NC, n_stats, 8, 128), jnp.float32),
        grid_spec=pltpu.PrefetchScalarGridSpec(
            num_scalar_prefetch=0,
            grid=(NC, tiles_per_core),
            in_specs=[tile_spec] * (num_layers + 1),
            out_specs=pl.BlockSpec((1, n_stats, 8, 128),
                                   lambda c, i: (c, 0, 0, 0)),
        ),
        compiler_params=pltpu.CompilerParams(
            dimension_semantics=("parallel", "arbitrary")),
    )(*preds2d, tgt2d)

    # ---- tiny finalize in plain JAX (a few dozen scalar ops) ------------------
    sums = jnp.sum(partial, axis=(0, 2, 3))         # (1 + 4L,)
    n_f = jnp.float32(n)
    pos_cnt = sums[0]
    beta = (n_f - pos_cnt) / (n_f + EPS)            # targets are {0,1}
    total = jnp.float32(0.0)
    for l, w in enumerate(layer_weights):
        base = 1 + 4 * l
        s_bce, s_bce_t = sums[base], sums[base + 1]
        s_p, s_pt = sums[base + 2], sums[base + 3]
        bal = (beta * s_bce_t + (1.0 - beta) * (s_bce - s_bce_t)) / (n_f + EPS)
        dice = 1.0 - 2.0 * s_pt / (s_p + pos_cnt + EPS)
        total = total + (bal + float(nmn) * dice) * float(w)
    return jnp.reshape(total, (1,)).astype(jnp.float32)   # matches torch.zeros([1])


def _reference(predict_array, target, nmn=NMN, layer_weights=LAYER_WEIGHTS):
    t = target.astype(jnp.float32).reshape(-1)
    n = t.size
    pos_cnt = jnp.sum(t)
    beta = (n - pos_cnt) / (n + EPS)
    total_loss = 0.0
    for w, logits in zip(layer_weights, predict_array):
        x = logits.astype(jnp.float32).reshape(-1)
        p = jax.nn.sigmoid(x)
        bce = jnp.maximum(x, 0.0) - x * t + jnp.log1p(jnp.exp(-jnp.abs(x)))
        bal = jnp.sum(beta * bce * t + (1.0 - beta) * bce * (1.0 - t)) / (n + EPS)
        dice = 1.0 - 2.0 * jnp.sum(p * t) / (jnp.sum(p) + pos_cnt + EPS)
        total_loss = total_loss + (bal + nmn * dice) * w
    return jnp.asarray([total_loss], dtype=jnp.float32)


if __name__ == "__main__":
    key = jax.random.PRNGKey(0)
    B, C, H, W = 2, 4, 16, 16          # B*C*H*W = 2048 elements
    k_t, *k_preds = jax.random.split(key, 6)

    target = jax.random.bernoulli(k_t, p=0.3, shape=(B, C, H, W)).astype(jnp.float32)
    predict_array = [jax.random.normal(k, (B, C, H, W), dtype=jnp.float32)
                     for k in k_preds]

    loss = jax.block_until_ready(custom_loss(predict_array, target))
    ref = _reference(predict_array, target)
    # approx reciprocal feeds the Dice sums -> allow a few 1e-3 relative slack.
    np.testing.assert_allclose(np.asarray(loss), np.asarray(ref),
                               rtol=5e-3, atol=1e-4)
    print("KERNEL_OK")
</pallas_src>

<mosaic_0001>
module attributes {stable_mosaic.version = 11 : i64} {
  func.func @kernel(%arg0: i32, %arg1: i32, %arg2: memref<8x128xf32, #tpu.memory_space<vmem>>, %arg3: memref<8x128xf32, #tpu.memory_space<vmem>>, %arg4: memref<8x128xf32, #tpu.memory_space<vmem>>, %arg5: memref<8x128xf32, #tpu.memory_space<vmem>>, %arg6: memref<8x128xf32, #tpu.memory_space<vmem>>, %arg7: memref<8x128xf32, #tpu.memory_space<vmem>>, %arg8: memref<1x21x8x128xf32, #tpu.memory_space<vmem>>) attributes {dimension_semantics = [#tpu.dimension_semantics<parallel>, #tpu.dimension_semantics<arbitrary>], iteration_bounds = array<i64: 2, 1>, scalar_prefetch = 0 : i64, scratch_operands = 0 : i64, tpu.core_type = #tpu.core_type<tc>, window_params = [{transform_indices = @transform_0, window_bounds = array<i64: 8, 128>}, {transform_indices = @transform_1, window_bounds = array<i64: 8, 128>}, {transform_indices = @transform_2, window_bounds = array<i64: 8, 128>}, {transform_indices = @transform_3, window_bounds = array<i64: 8, 128>}, {transform_indices = @transform_4, window_bounds = array<i64: 8, 128>}, {transform_indices = @transform_5, window_bounds = array<i64: 8, 128>}, {transform_indices = @transform_6, window_bounds = array<i64: 1, 21, 8, 128>}]} {
    %c0_i32 = arith.constant 0 : i32
    %0 = arith.cmpi eq, %arg1, %c0_i32 : i32
    %1 = arith.extui %0 : i1 to i32
    %c0_i32_0 = arith.constant 0 : i32
    %2 = arith.cmpi ne, %1, %c0_i32_0 : i32
    scf.if %2 {
      %cst_181 = arith.constant 0.000000e+00 : f32
      %245 = vector.broadcast %cst_181 : f32 to vector<1x21x8x128xf32>
      %c0_182 = arith.constant 0 : index
      %c0_183 = arith.constant 0 : index
      %c0_184 = arith.constant 0 : index
      %c0_185 = arith.constant 0 : index
      %246 = vector.load %arg8[%c0_182, %c0_183, %c0_184, %c0_185] : memref<1x21x8x128xf32, #tpu.memory_space<vmem>>, vector<1x21x8x128xf32>
      tpu.vector_store %arg8[%c0_182, %c0_183, %c0_184, %c0_185], %245 {strides = array<i32>} : memref<1x21x8x128xf32, #tpu.memory_space<vmem>>, vector<1x21x8x128xf32>,
    } else {
    }
    %c0_i32_1 = arith.constant 0 : i32
    %c1_i32 = arith.constant 1 : i32
    %3 = arith.muli %c0_i32_1, %c1_i32 : i32
    %c0_i32_2 = arith.constant 0 : i32
    %4 = arith.addi %c0_i32_2, %3 : i32
    %c8_i32 = arith.constant 8 : i32
    %5 = arith.muli %4, %c8_i32 : i32
    %6 = tpu.assume_multiple %5, 8 : i32
    %7 = arith.index_cast %6 : i32 to index
    %c0 = arith.constant 0 : index
    %8 = vector.load %arg7[%7, %c0] : memref<8x128xf32, #tpu.memory_space<vmem>>, vector<8x128xf32>
    %c0_3 = arith.constant 0 : index
    %c0_4 = arith.constant 0 : index
    %c0_5 = arith.constant 0 : index
    %c0_6 = arith.constant 0 : index
    %9 = vector.load %arg8[%c0_3, %c0_4, %c0_5, %c0_6] : memref<1x21x8x128xf32, #tpu.memory_space<vmem>>, vector<1x1x8x128xf32>
    %10 = vector.shape_cast %9 : vector<1x1x8x128xf32> to vector<8x128xf32>
    %11 = arith.addf %10, %8 : vector<8x128xf32>
    %c0_7 = arith.constant 0 : index
    %c0_8 = arith.constant 0 : index
    %c0_9 = arith.constant 0 : index
    %c0_10 = arith.constant 0 : index
    %12 = vector.load %arg8[%c0_7, %c0_8, %c0_9, %c0_10] : memref<1x21x8x128xf32, #tpu.memory_space<vmem>>, vector<1x1x8x128xf32>
    %13 = vector.shape_cast %12 : vector<1x1x8x128xf32> to vector<8x128xf32>
    %14 = vector.shape_cast %11 : vector<8x128xf32> to vector<1x1x8x128xf32>
    tpu.vector_store %arg8[%c0_7, %c0_8, %c0_9, %c0_10], %14 {strides = array<i32>} : memref<1x21x8x128xf32, #tpu.memory_space<vmem>>, vector<1x1x8x128xf32>,
    %15 = arith.index_cast %6 : i32 to index
    %c0_11 = arith.constant 0 : index
    %16 = vector.load %arg2[%15, %c0_11] : memref<8x128xf32, #tpu.memory_space<vmem>>, vector<8x128xf32>
    %17 = math.absf %16 : vector<8x128xf32>
    %cst = arith.constant 0.000000e+00 : f32
    %18 = vector.broadcast %cst : f32 to vector<8x128xf32>
    %19 = arith.subf %18, %17 : vector<8x128xf32>
    %20 = math.exp %19 : vector<8x128xf32>
    %cst_12 = arith.constant 1.000000e+00 : f32
    %21 = vector.broadcast %cst_12 : f32 to vector<8x128xf32>
    %22 = arith.addf %21, %20 : vector<8x128xf32>
    %23 = tpu.reciprocal %22 {approx = true} : vector<8x128xf32> -> vector<8x128xf32>
    %cst_13 = arith.constant 0.000000e+00 : f32
    %24 = vector.broadcast %cst_13 : f32 to vector<8x128xf32>
    %25 = arith.cmpf oge, %16, %24 : vector<8x128xf32>
    %cst_14 = arith.constant 1.000000e+00 : f32
    %26 = vector.broadcast %cst_14 : f32 to vector<8x128xf32>
    %27 = arith.select %25, %26, %20 : vector<8x128xi1>, vector<8x128xf32>
    %28 = arith.mulf %27, %23 : vector<8x128xf32>
    %cst_15 = arith.constant 0.000000e+00 : f32
    %29 = vector.broadcast %cst_15 : f32 to vector<8x128xf32>
    %30 = arith.maximumf %16, %29 : vector<8x128xf32>
    %31 = arith.mulf %16, %8 : vector<8x128xf32>
    %32 = arith.subf %30, %31 : vector<8x128xf32>
    %33 = math.log %22 : vector<8x128xf32>
    %34 = arith.addf %32, %33 : vector<8x128xf32>
    %c0_16 = arith.constant 0 : index
    %c1 = arith.constant 1 : index
    %c0_17 = arith.constant 0 : index
    %c0_18 = arith.constant 0 : index
    %35 = vector.load %arg8[%c0_16, %c1, %c0_17, %c0_18] : memref<1x21x8x128xf32, #tpu.memory_space<vmem>>, vector<1x1x8x128xf32>
    %36 = vector.shape_cast %35 : vector<1x1x8x128xf32> to vector<8x128xf32>
    %37 = arith.addf %36, %34 : vector<8x128xf32>
    %c0_19 = arith.constant 0 : index
    %c1_20 = arith.constant 1 : index
    %c0_21 = arith.constant 0 : index
    %c0_22 = arith.constant 0 : index
    %38 = vector.load %arg8[%c0_19, %c1_20, %c0_21, %c0_22] : memref<1x21x8x128xf32, #tpu.memory_space<vmem>>, vector<1x1x8x128xf32>
    %39 = vector.shape_cast %38 : vector<1x1x8x128xf32> to vector<8x128xf32>
    %40 = vector.shape_cast %37 : vector<8x128xf32> to vector<1x1x8x128xf32>
    tpu.vector_store %arg8[%c0_19, %c1_20, %c0_21, %c0_22], %40 {strides = array<i32>} : memref<1x21x8x128xf32, #tpu.memory_space<vmem>>, vector<1x1x8x128xf32>,
    %c0_23 = arith.constant 0 : index
    %c2 = arith.constant 2 : index
    %c0_24 = arith.constant 0 : index
    %c0_25 = arith.constant 0 : index
    %41 = vector.load %arg8[%c0_23, %c2, %c0_24, %c0_25] : memref<1x21x8x128xf32, #tpu.memory_space<vmem>>, vector<1x1x8x128xf32>
    %42 = vector.shape_cast %41 : vector<1x1x8x128xf32> to vector<8x128xf32>
    %43 = arith.mulf %34, %8 : vector<8x128xf32>
    %44 = arith.addf %42, %43 : vector<8x128xf32>
    %c0_26 = arith.constant 0 : index
    %c2_27 = arith.constant 2 : index
    %c0_28 = arith.constant 0 : index
    %c0_29 = arith.constant 0 : index
    %45 = vector.load %arg8[%c0_26, %c2_27, %c0_28, %c0_29] : memref<1x21x8x128xf32, #tpu.memory_space<vmem>>, vector<1x1x8x128xf32>
    %46 = vector.shape_cast %45 : vector<1x1x8x128xf32> to vector<8x128xf32>
    %47 = vector.shape_cast %44 : vector<8x128xf32> to vector<1x1x8x128xf32>
    tpu.vector_store %arg8[%c0_26, %c2_27, %c0_28, %c0_29], %47 {strides = array<i32>} : memref<1x21x8x128xf32, #tpu.memory_space<vmem>>, vector<1x1x8x128xf32>,
    %c0_30 = arith.constant 0 : index
    %c3 = arith.constant 3 : index
    %c0_31 = arith.constant 0 : index
    %c0_32 = arith.constant 0 : index
    %48 = vector.load %arg8[%c0_30, %c3, %c0_31, %c0_32] : memref<1x21x8x128xf32, #tpu.memory_space<vmem>>, vector<1x1x8x128xf32>
    %49 = vector.shape_cast %48 : vector<1x1x8x128xf32> to vector<8x128xf32>
    %50 = arith.addf %49, %28 : vector<8x128xf32>
    %c0_33 = arith.constant 0 : index
    %c3_34 = arith.constant 3 : index
    %c0_35 = arith.constant 0 : index
    %c0_36 = arith.constant 0 : index
    %51 = vector.load %arg8[%c0_33, %c3_34, %c0_35, %c0_36] : memref<1x21x8x128xf32, #tpu.memory_space<vmem>>, vector<1x1x8x128xf32>
    %52 = vector.shape_cast %51 : vector<1x1x8x128xf32> to vector<8x128xf32>
    %53 = vector.shape_cast %50 : vector<8x128xf32> to vector<1x1x8x128xf32>
    tpu.vector_store %arg8[%c0_33, %c3_34, %c0_35, %c0_36], %53 {strides = array<i32>} : memref<1x21x8x128xf32, #tpu.memory_space<vmem>>, vector<1x1x8x128xf32>,
    %c0_37 = arith.constant 0 : index
    %c4 = arith.constant 4 : index
    %c0_38 = arith.constant 0 : index
    %c0_39 = arith.constant 0 : index
    %54 = vector.load %arg8[%c0_37, %c4, %c0_38, %c0_39] : memref<1x21x8x128xf32, #tpu.memory_space<vmem>>, vector<1x1x8x128xf32>
    %55 = vector.shape_cast %54 : vector<1x1x8x128xf32> to vector<8x128xf32>
    %56 = arith.mulf %28, %8 : vector<8x128xf32>
    %57 = arith.addf %55, %56 : vector<8x128xf32>
    %c0_40 = arith.constant 0 : index
    %c4_41 = arith.constant 4 : index
    %c0_42 = arith.constant 0 : index
    %c0_43 = arith.constant 0 : index
    %58 = vector.load %arg8[%c0_40, %c4_41, %c0_42, %c0_43] : memref<1x21x8x128xf32, #tpu.memory_space<vmem>>, vector<1x1x8x128xf32>
    %59 = vector.shape_cast %58 : vector<1x1x8x128xf32> to vector<8x128xf32>
    %60 = vector.shape_cast %57 : vector<8x128xf32> to vector<1x1x8x128xf32>
    tpu.vector_store %arg8[%c0_40, %c4_41, %c0_42, %c0_43], %60 {strides = array<i32>} : memref<1x21x8x128xf32, #tpu.memory_space<vmem>>, vector<1x1x8x128xf32>,
    %61 = arith.index_cast %6 : i32 to index
    %c0_44 = arith.constant 0 : index
    %62 = vector.load %arg3[%61, %c0_44] : memref<8x128xf32, #tpu.memory_space<vmem>>, vector<8x128xf32>
    %63 = math.absf %62 : vector<8x128xf32>
    %cst_45 = arith.constant 0.000000e+00 : f32
    %64 = vector.broadcast %cst_45 : f32 to vector<8x128xf32>
    %65 = arith.subf %64, %63 : vector<8x128xf32>
    %66 = math.exp %65 : vector<8x128xf32>
    %cst_46 = arith.constant 1.000000e+00 : f32
    %67 = vector.broadcast %cst_46 : f32 to vector<8x128xf32>
    %68 = arith.addf %67, %66 : vector<8x128xf32>
    %69 = tpu.reciprocal %68 {approx = true} : vector<8x128xf32> -> vector<8x128xf32>
    %cst_47 = arith.constant 0.000000e+00 : f32
    %70 = vector.broadcast %cst_47 : f32 to vector<8x128xf32>
    %71 = arith.cmpf oge, %62, %70 : vector<8x128xf32>
    %cst_48 = arith.constant 1.000000e+00 : f32
    %72 = vector.broadcast %cst_48 : f32 to vector<8x128xf32>
    %73 = arith.select %71, %72, %66 : vector<8x128xi1>, vector<8x128xf32>
    %74 = arith.mulf %73, %69 : vector<8x128xf32>
    %cst_49 = arith.constant 0.000000e+00 : f32
    %75 = vector.broadcast %cst_49 : f32 to vector<8x128xf32>
    %76 = arith.maximumf %62, %75 : vector<8x128xf32>
    %77 = arith.mulf %62, %8 : vector<8x128xf32>
    %78 = arith.subf %76, %77 : vector<8x128xf32>
    %79 = math.log %68 : vector<8x128xf32>
    %80 = arith.addf %78, %79 : vector<8x128xf32>
    %c0_50 = arith.constant 0 : index
    %c5 = arith.constant 5 : index
    %c0_51 = arith.constant 0 : index
    %c0_52 = arith.constant 0 : index
    %81 = vector.load %arg8[%c0_50, %c5, %c0_51, %c0_52] : memref<1x21x8x128xf32, #tpu.memory_space<vmem>>, vector<1x1x8x128xf32>
    %82 = vector.shape_cast %81 : vector<1x1x8x128xf32> to vector<8x128xf32>
    %83 = arith.addf %82, %80 : vector<8x128xf32>
    %c0_53 = arith.constant 0 : index
    %c5_54 = arith.constant 5 : index
    %c0_55 = arith.constant 0 : index
    %c0_56 = arith.constant 0 : index
    %84 = vector.load %arg8[%c0_53, %c5_54, %c0_55, %c0_56] : memref<1x21x8x128xf32, #tpu.memory_space<vmem>>, vector<1x1x8x128xf32>
    %85 = vector.shape_cast %84 : vector<1x1x8x128xf32> to vector<8x128xf32>
    %86 = vector.shape_cast %83 : vector<8x128xf32> to vector<1x1x8x128xf32>
    tpu.vector_store %arg8[%c0_53, %c5_54, %c0_55, %c0_56], %86 {strides = array<i32>} : memref<1x21x8x128xf32, #tpu.memory_space<vmem>>, vector<1x1x8x128xf32>,
    %c0_57 = arith.constant 0 : index
    %c6 = arith.constant 6 : index
    %c0_58 = arith.constant 0 : index
    %c0_59 = arith.constant 0 : index
    %87 = vector.load %arg8[%c0_57, %c6, %c0_58, %c0_59] : memref<1x21x8x128xf32, #tpu.memory_space<vmem>>, vector<1x1x8x128xf32>
    %88 = vector.shape_cast %87 : vector<1x1x8x128xf32> to vector<8x128xf32>
    %89 = arith.mulf %80, %8 : vector<8x128xf32>
    %90 = arith.addf %88, %89 : vector<8x128xf32>
    %c0_60 = arith.constant 0 : index
    %c6_61 = arith.constant 6 : index
    %c0_62 = arith.constant 0 : index
    %c0_63 = arith.constant 0 : index
    %91 = vector.load %arg8[%c0_60, %c6_61, %c0_62, %c0_63] : memref<1x21x8x128xf32, #tpu.memory_space<vmem>>, vector<1x1x8x128xf32>
    %92 = vector.shape_cast %91 : vector<1x1x8x128xf32> to vector<8x128xf32>
    %93 = vector.shape_cast %90 : vector<8x128xf32> to vector<1x1x8x128xf32>
    tpu.vector_store %arg8[%c0_60, %c6_61, %c0_62, %c0_63], %93 {strides = array<i32>} : memref<1x21x8x128xf32, #tpu.memory_space<vmem>>, vector<1x1x8x128xf32>,
    %c0_64 = arith.constant 0 : index
    %c7 = arith.constant 7 : index
    %c0_65 = arith.constant 0 : index
    %c0_66 = arith.constant 0 : index
    %94 = vector.load %arg8[%c0_64, %c7, %c0_65, %c0_66] : memref<1x21x8x128xf32, #tpu.memory_space<vmem>>, vector<1x1x8x128xf32>
    %95 = vector.shape_cast %94 : vector<1x1x8x128xf32> to vector<8x128xf32>
    %96 = arith.addf %95, %74 : vector<8x128xf32>
    %c0_67 = arith.constant 0 : index
    %c7_68 = arith.constant 7 : index
    %c0_69 = arith.constant 0 : index
    %c0_70 = arith.constant 0 : index
    %97 = vector.load %arg8[%c0_67, %c7_68, %c0_69, %c0_70] : memref<1x21x8x128xf32, #tpu.memory_space<vmem>>, vector<1x1x8x128xf32>
    %98 = vector.shape_cast %97 : vector<1x1x8x128xf32> to vector<8x128xf32>
    %99 = vector.shape_cast %96 : vector<8x128xf32> to vector<1x1x8x128xf32>
    tpu.vector_store %arg8[%c0_67, %c7_68, %c0_69, %c0_70], %99 {strides = array<i32>} : memref<1x21x8x128xf32, #tpu.memory_space<vmem>>, vector<1x1x8x128xf32>,
    %c0_71 = arith.constant 0 : index
    %c8 = arith.constant 8 : index
    %c0_72 = arith.constant 0 : index
    %c0_73 = arith.constant 0 : index
    %100 = vector.load %arg8[%c0_71, %c8, %c0_72, %c0_73] : memref<1x21x8x128xf32, #tpu.memory_space<vmem>>, vector<1x1x8x128xf32>
    %101 = vector.shape_cast %100 : vector<1x1x8x128xf32> to vector<8x128xf32>
    %102 = arith.mulf %74, %8 : vector<8x128xf32>
    %103 = arith.addf %101, %102 : vector<8x128xf32>
    %c0_74 = arith.constant 0 : index
    %c8_75 = arith.constant 8 : index
    %c0_76 = arith.constant 0 : index
    %c0_77 = arith.constant 0 : index
    %104 = vector.load %arg8[%c0_74, %c8_75, %c0_76, %c0_77] : memref<1x21x8x128xf32, #tpu.memory_space<vmem>>, vector<1x1x8x128xf32>
    %105 = vector.shape_cast %104 : vector<1x1x8x128xf32> to vector<8x128xf32>
    %106 = vector.shape_cast %103 : vector<8x128xf32> to vector<1x1x8x128xf32>
    tpu.vector_store %arg8[%c0_74, %c8_75, %c0_76, %c0_77], %106 {strides = array<i32>} : memref<1x21x8x128xf32, #tpu.memory_space<vmem>>, vector<1x1x8x128xf32>,
    %107 = arith.index_cast %6 : i32 to index
    %c0_78 = arith.constant 0 : index
    %108 = vector.load %arg4[%107, %c0_78] : memref<8x128xf32, #tpu.memory_space<vmem>>, vector<8x128xf32>
    %109 = math.absf %108 : vector<8x128xf32>
    %cst_79 = arith.constant 0.000000e+00 : f32
    %110 = vector.broadcast %cst_79 : f32 to vector<8x128xf32>
    %111 = arith.subf %110, %109 : vector<8x128xf32>
    %112 = math.exp %111 : vector<8x128xf32>
    %cst_80 = arith.constant 1.000000e+00 : f32
    %113 = vector.broadcast %cst_80 : f32 to vector<8x128xf32>
    %114 = arith.addf %113, %112 : vector<8x128xf32>
    %115 = tpu.reciprocal %114 {approx = true} : vector<8x128xf32> -> vector<8x128xf32>
    %cst_81 = arith.constant 0.000000e+00 : f32
    %116 = vector.broadcast %cst_81 : f32 to vector<8x128xf32>
    %117 = arith.cmpf oge, %108, %116 : vector<8x128xf32>
    %cst_82 = arith.constant 1.000000e+00 : f32
    %118 = vector.broadcast %cst_82 : f32 to vector<8x128xf32>
    %119 = arith.select %117, %118, %112 : vector<8x128xi1>, vector<8x128xf32>
    %120 = arith.mulf %119, %115 : vector<8x128xf32>
    %cst_83 = arith.constant 0.000000e+00 : f32
    %121 = vector.broadcast %cst_83 : f32 to vector<8x128xf32>
    %122 = arith.maximumf %108, %121 : vector<8x128xf32>
    %123 = arith.mulf %108, %8 : vector<8x128xf32>
    %124 = arith.subf %122, %123 : vector<8x128xf32>
    %125 = math.log %114 : vector<8x128xf32>
    %126 = arith.addf %124, %125 : vector<8x128xf32>
    %c0_84 = arith.constant 0 : index
    %c9 = arith.constant 9 : index
    %c0_85 = arith.constant 0 : index
    %c0_86 = arith.constant 0 : index
    %127 = vector.load %arg8[%c0_84, %c9, %c0_85, %c0_86] : memref<1x21x8x128xf32, #tpu.memory_space<vmem>>, vector<1x1x8x128xf32>
    %128 = vector.shape_cast %127 : vector<1x1x8x128xf32> to vector<8x128xf32>
    %129 = arith.addf %128, %126 : vector<8x128xf32>
    %c0_87 = arith.constant 0 : index
    %c9_88 = arith.constant 9 : index
    %c0_89 = arith.constant 0 : index
    %c0_90 = arith.constant 0 : index
    %130 = vector.load %arg8[%c0_87, %c9_88, %c0_89, %c0_90] : memref<1x21x8x128xf32, #tpu.memory_space<vmem>>, vector<1x1x8x128xf32>
    %131 = vector.shape_cast %130 : vector<1x1x8x128xf32> to vector<8x128xf32>
    %132 = vector.shape_cast %129 : vector<8x128xf32> to vector<1x1x8x128xf32>
    tpu.vector_store %arg8[%c0_87, %c9_88, %c0_89, %c0_90], %132 {strides = array<i32>} : memref<1x21x8x128xf32, #tpu.memory_space<vmem>>, vector<1x1x8x128xf32>,
    %c0_91 = arith.constant 0 : index
    %c10 = arith.constant 10 : index
    %c0_92 = arith.constant 0 : index
    %c0_93 = arith.constant 0 : index
    %133 = vector.load %arg8[%c0_91, %c10, %c0_92, %c0_93] : memref<1x21x8x128xf32, #tpu.memory_space<vmem>>, vector<1x1x8x128xf32>
    %134 = vector.shape_cast %133 : vector<1x1x8x128xf32> to vector<8x128xf32>
    %135 = arith.mulf %126, %8 : vector<8x128xf32>
    %136 = arith.addf %134, %135 : vector<8x128xf32>
    %c0_94 = arith.constant 0 : index
    %c10_95 = arith.constant 10 : index
    %c0_96 = arith.constant 0 : index
    %c0_97 = arith.constant 0 : index
    %137 = vector.load %arg8[%c0_94, %c10_95, %c0_96, %c0_97] : memref<1x21x8x128xf32, #tpu.memory_space<vmem>>, vector<1x1x8x128xf32>
    %138 = vector.shape_cast %137 : vector<1x1x8x128xf32> to vector<8x128xf32>
    %139 = vector.shape_cast %136 : vector<8x128xf32> to vector<1x1x8x128xf32>
    tpu.vector_store %arg8[%c0_94, %c10_95, %c0_96, %c0_97], %139 {strides = array<i32>} : memref<1x21x8x128xf32, #tpu.memory_space<vmem>>, vector<1x1x8x128xf32>,
    %c0_98 = arith.constant 0 : index
    %c11 = arith.constant 11 : index
    %c0_99 = arith.constant 0 : index
    %c0_100 = arith.constant 0 : index
    %140 = vector.load %arg8[%c0_98, %c11, %c0_99, %c0_100] : memref<1x21x8x128xf32, #tpu.memory_space<vmem>>, vector<1x1x8x128xf32>
    %141 = vector.shape_cast %140 : vector<1x1x8x128xf32> to vector<8x128xf32>
    %142 = arith.addf %141, %120 : vector<8x128xf32>
    %c0_101 = arith.constant 0 : index
    %c11_102 = arith.constant 11 : index
    %c0_103 = arith.constant 0 : index
    %c0_104 = arith.constant 0 : index
    %143 = vector.load %arg8[%c0_101, %c11_102, %c0_103, %c0_104] : memref<1x21x8x128xf32, #tpu.memory_space<vmem>>, vector<1x1x8x128xf32>
    %144 = vector.shape_cast %143 : vector<1x1x8x128xf32> to vector<8x128xf32>
    %145 = vector.shape_cast %142 : vector<8x128xf32> to vector<1x1x8x128xf32>
    tpu.vector_store %arg8[%c0_101, %c11_102, %c0_103, %c0_104], %145 {strides = array<i32>} : memref<1x21x8x128xf32, #tpu.memory_space<vmem>>, vector<1x1x8x128xf32>,
    %c0_105 = arith.constant 0 : index
    %c12 = arith.constant 12 : index
    %c0_106 = arith.constant 0 : index
    %c0_107 = arith.constant 0 : index
    %146 = vector.load %arg8[%c0_105, %c12, %c0_106, %c0_107] : memref<1x21x8x128xf32, #tpu.memory_space<vmem>>, vector<1x1x8x128xf32>
    %147 = vector.shape_cast %146 : vector<1x1x8x128xf32> to vector<8x128xf32>
    %148 = arith.mulf %120, %8 : vector<8x128xf32>
    %149 = arith.addf %147, %148 : vector<8x128xf32>
    %c0_108 = arith.constant 0 : index
    %c12_109 = arith.constant 12 : index
    %c0_110 = arith.constant 0 : index
    %c0_111 = arith.constant 0 : index
    %150 = vector.load %arg8[%c0_108, %c12_109, %c0_110, %c0_111] : memref<1x21x8x128xf32, #tpu.memory_space<vmem>>, vector<1x1x8x128xf32>
    %151 = vector.shape_cast %150 : vector<1x1x8x128xf32> to vector<8x128xf32>
    %152 = vector.shape_cast %149 : vector<8x128xf32> to vector<1x1x8x128xf32>
    tpu.vector_store %arg8[%c0_108, %c12_109, %c0_110, %c0_111], %152 {strides = array<i32>} : memref<1x21x8x128xf32, #tpu.memory_space<vmem>>, vector<1x1x8x128xf32>,
    %153 = arith.index_cast %6 : i32 to index
    %c0_112 = arith.constant 0 : index
    %154 = vector.load %arg5[%153, %c0_112] : memref<8x128xf32, #tpu.memory_space<vmem>>, vector<8x128xf32>
    %155 = math.absf %154 : vector<8x128xf32>
    %cst_113 = arith.constant 0.000000e+00 : f32
    %156 = vector.broadcast %cst_113 : f32 to vector<8x128xf32>
    %157 = arith.subf %156, %155 : vector<8x128xf32>
    %158 = math.exp %157 : vector<8x128xf32>
    %cst_114 = arith.constant 1.000000e+00 : f32
    %159 = vector.broadcast %cst_114 : f32 to vector<8x128xf32>
    %160 = arith.addf %159, %158 : vector<8x128xf32>
    %161 = tpu.reciprocal %160 {approx = true} : vector<8x128xf32> -> vector<8x128xf32>
    %cst_115 = arith.constant 0.000000e+00 : f32
    %162 = vector.broadcast %cst_115 : f32 to vector<8x128xf32>
    %163 = arith.cmpf oge, %154, %162 : vector<8x128xf32>
    %cst_116 = arith.constant 1.000000e+00 : f32
    %164 = vector.broadcast %cst_116 : f32 to vector<8x128xf32>
    %165 = arith.select %163, %164, %158 : vector<8x128xi1>, vector<8x128xf32>
    %166 = arith.mulf %165, %161 : vector<8x128xf32>
    %cst_117 = arith.constant 0.000000e+00 : f32
    %167 = vector.broadcast %cst_117 : f32 to vector<8x128xf32>
    %168 = arith.maximumf %154, %167 : vector<8x128xf32>
    %169 = arith.mulf %154, %8 : vector<8x128xf32>
    %170 = arith.subf %168, %169 : vector<8x128xf32>
    %171 = math.log %160 : vector<8x128xf32>
    %172 = arith.addf %170, %171 : vector<8x128xf32>
    %c0_118 = arith.constant 0 : index
    %c13 = arith.constant 13 : index
    %c0_119 = arith.constant 0 : index
    %c0_120 = arith.constant 0 : index
    %173 = vector.load %arg8[%c0_118, %c13, %c0_119, %c0_120] : memref<1x21x8x128xf32, #tpu.memory_space<vmem>>, vector<1x1x8x128xf32>
    %174 = vector.shape_cast %173 : vector<1x1x8x128xf32> to vector<8x128xf32>
    %175 = arith.addf %174, %172 : vector<8x128xf32>
    %c0_121 = arith.constant 0 : index
    %c13_122 = arith.constant 13 : index
    %c0_123 = arith.constant 0 : index
    %c0_124 = arith.constant 0 : index
    %176 = vector.load %arg8[%c0_121, %c13_122, %c0_123, %c0_124] : memref<1x21x8x128xf32, #tpu.memory_space<vmem>>, vector<1x1x8x128xf32>
    %177 = vector.shape_cast %176 : vector<1x1x8x128xf32> to vector<8x128xf32>
    %178 = vector.shape_cast %175 : vector<8x128xf32> to vector<1x1x8x128xf32>
    tpu.vector_store %arg8[%c0_121, %c13_122, %c0_123, %c0_124], %178 {strides = array<i32>} : memref<1x21x8x128xf32, #tpu.memory_space<vmem>>, vector<1x1x8x128xf32>,
    %c0_125 = arith.constant 0 : index
    %c14 = arith.constant 14 : index
    %c0_126 = arith.constant 0 : index
    %c0_127 = arith.constant 0 : index
    %179 = vector.load %arg8[%c0_125, %c14, %c0_126, %c0_127] : memref<1x21x8x128xf32, #tpu.memory_space<vmem>>, vector<1x1x8x128xf32>
    %180 = vector.shape_cast %179 : vector<1x1x8x128xf32> to vector<8x128xf32>
    %181 = arith.mulf %172, %8 : vector<8x128xf32>
    %182 = arith.addf %180, %181 : vector<8x128xf32>
    %c0_128 = arith.constant 0 : index
    %c14_129 = arith.constant 14 : index
    %c0_130 = arith.constant 0 : index
    %c0_131 = arith.constant 0 : index
    %183 = vector.load %arg8[%c0_128, %c14_129, %c0_130, %c0_131] : memref<1x21x8x128xf32, #tpu.memory_space<vmem>>, vector<1x1x8x128xf32>
    %184 = vector.shape_cast %183 : vector<1x1x8x128xf32> to vector<8x128xf32>
    %185 = vector.shape_cast %182 : vector<8x128xf32> to vector<1x1x8x128xf32>
    tpu.vector_store %arg8[%c0_128, %c14_129, %c0_130, %c0_131], %185 {strides = array<i32>} : memref<1x21x8x128xf32, #tpu.memory_space<vmem>>, vector<1x1x8x128xf32>,
    %c0_132 = arith.constant 0 : index
    %c15 = arith.constant 15 : index
    %c0_133 = arith.constant 0 : index
    %c0_134 = arith.constant 0 : index
    %186 = vector.load %arg8[%c0_132, %c15, %c0_133, %c0_134] : memref<1x21x8x128xf32, #tpu.memory_space<vmem>>, vector<1x1x8x128xf32>
    %187 = vector.shape_cast %186 : vector<1x1x8x128xf32> to vector<8x128xf32>
    %188 = arith.addf %187, %166 : vector<8x128xf32>
    %c0_135 = arith.constant 0 : index
    %c15_136 = arith.constant 15 : index
    %c0_137 = arith.constant 0 : index
    %c0_138 = arith.constant 0 : index
    %189 = vector.load %arg8[%c0_135, %c15_136, %c0_137, %c0_138] : memref<1x21x8x128xf32, #tpu.memory_space<vmem>>, vector<1x1x8x128xf32>
    %190 = vector.shape_cast %189 : vector<1x1x8x128xf32> to vector<8x128xf32>
    %191 = vector.shape_cast %188 : vector<8x128xf32> to vector<1x1x8x128xf32>
    tpu.vector_store %arg8[%c0_135, %c15_136, %c0_137, %c0_138], %191 {strides = array<i32>} : memref<1x21x8x128xf32, #tpu.memory_space<vmem>>, vector<1x1x8x128xf32>,
    %c0_139 = arith.constant 0 : index
    %c16 = arith.constant 16 : index
    %c0_140 = arith.constant 0 : index
    %c0_141 = arith.constant 0 : index
    %192 = vector.load %arg8[%c0_139, %c16, %c0_140, %c0_141] : memref<1x21x8x128xf32, #tpu.memory_space<vmem>>, vector<1x1x8x128xf32>
    %193 = vector.shape_cast %192 : vector<1x1x8x128xf32> to vector<8x128xf32>
    %194 = arith.mulf %166, %8 : vector<8x128xf32>
    %195 = arith.addf %193, %194 : vector<8x128xf32>
    %c0_142 = arith.constant 0 : index
    %c16_143 = arith.constant 16 : index
    %c0_144 = arith.constant 0 : index
    %c0_145 = arith.constant 0 : index
    %196 = vector.load %arg8[%c0_142, %c16_143, %c0_144, %c0_145] : memref<1x21x8x128xf32, #tpu.memory_space<vmem>>, vector<1x1x8x128xf32>
    %197 = vector.shape_cast %196 : vector<1x1x8x128xf32> to vector<8x128xf32>
    %198 = vector.shape_cast %195 : vector<8x128xf32> to vector<1x1x8x128xf32>
    tpu.vector_store %arg8[%c0_142, %c16_143, %c0_144, %c0_145], %198 {strides = array<i32>} : memref<1x21x8x128xf32, #tpu.memory_space<vmem>>, vector<1x1x8x128xf32>,
    %199 = arith.index_cast %6 : i32 to index
    %c0_146 = arith.constant 0 : index
    %200 = vector.load %arg6[%199, %c0_146] : memref<8x128xf32, #tpu.memory_space<vmem>>, vector<8x128xf32>
    %201 = math.absf %200 : vector<8x128xf32>
    %cst_147 = arith.constant 0.000000e+00 : f32
    %202 = vector.broadcast %cst_147 : f32 to vector<8x128xf32>
    %203 = arith.subf %202, %201 : vector<8x128xf32>
    %204 = math.exp %203 : vector<8x128xf32>
    %cst_148 = arith.constant 1.000000e+00 : f32
    %205 = vector.broadcast %cst_148 : f32 to vector<8x128xf32>
    %206 = arith.addf %205, %204 : vector<8x128xf32>
    %207 = tpu.reciprocal %206 {approx = true} : vector<8x128xf32> -> vector<8x128xf32>
    %cst_149 = arith.constant 0.000000e+00 : f32
    %208 = vector.broadcast %cst_149 : f32 to vector<8x128xf32>
    %209 = arith.cmpf oge, %200, %208 : vector<8x128xf32>
    %cst_150 = arith.constant 1.000000e+00 : f32
    %210 = vector.broadcast %cst_150 : f32 to vector<8x128xf32>
    %211 = arith.select %209, %210, %204 : vector<8x128xi1>, vector<8x128xf32>
    %212 = arith.mulf %211, %207 : vector<8x128xf32>
    %cst_151 = arith.constant 0.000000e+00 : f32
    %213 = vector.broadcast %cst_151 : f32 to vector<8x128xf32>
    %214 = arith.maximumf %200, %213 : vector<8x128xf32>
    %215 = arith.mulf %200, %8 : vector<8x128xf32>
    %216 = arith.subf %214, %215 : vector<8x128xf32>
    %217 = math.log %206 : vector<8x128xf32>
    %218 = arith.addf %216, %217 : vector<8x128xf32>
    %c0_152 = arith.constant 0 : index
    %c17 = arith.constant 17 : index
    %c0_153 = arith.constant 0 : index
    %c0_154 = arith.constant 0 : index
    %219 = vector.load %arg8[%c0_152, %c17, %c0_153, %c0_154] : memref<1x21x8x128xf32, #tpu.memory_space<vmem>>, vector<1x1x8x128xf32>
    %220 = vector.shape_cast %219 : vector<1x1x8x128xf32> to vector<8x128xf32>
    %221 = arith.addf %220, %218 : vector<8x128xf32>
    %c0_155 = arith.constant 0 : index
    %c17_156 = arith.constant 17 : index
    %c0_157 = arith.constant 0 : index
    %c0_158 = arith.constant 0 : index
    %222 = vector.load %arg8[%c0_155, %c17_156, %c0_157, %c0_158] : memref<1x21x8x128xf32, #tpu.memory_space<vmem>>, vector<1x1x8x128xf32>
    %223 = vector.shape_cast %222 : vector<1x1x8x128xf32> to vector<8x128xf32>
    %224 = vector.shape_cast %221 : vector<8x128xf32> to vector<1x1x8x128xf32>
    tpu.vector_store %arg8[%c0_155, %c17_156, %c0_157, %c0_158], %224 {strides = array<i32>} : memref<1x21x8x128xf32, #tpu.memory_space<vmem>>, vector<1x1x8x128xf32>,
    %c0_159 = arith.constant 0 : index
    %c18 = arith.constant 18 : index
    %c0_160 = arith.constant 0 : index
    %c0_161 = arith.constant 0 : index
    %225 = vector.load %arg8[%c0_159, %c18, %c0_160, %c0_161] : memref<1x21x8x128xf32, #tpu.memory_space<vmem>>, vector<1x1x8x128xf32>
    %226 = vector.shape_cast %225 : vector<1x1x8x128xf32> to vector<8x128xf32>
    %227 = arith.mulf %218, %8 : vector<8x128xf32>
    %228 = arith.addf %226, %227 : vector<8x128xf32>
    %c0_162 = arith.constant 0 : index
    %c18_163 = arith.constant 18 : index
    %c0_164 = arith.constant 0 : index
    %c0_165 = arith.constant 0 : index
    %229 = vector.load %arg8[%c0_162, %c18_163, %c0_164, %c0_165] : memref<1x21x8x128xf32, #tpu.memory_space<vmem>>, vector<1x1x8x128xf32>
    %230 = vector.shape_cast %229 : vector<1x1x8x128xf32> to vector<8x128xf32>
    %231 = vector.shape_cast %228 : vector<8x128xf32> to vector<1x1x8x128xf32>
    tpu.vector_store %arg8[%c0_162, %c18_163, %c0_164, %c0_165], %231 {strides = array<i32>} : memref<1x21x8x128xf32, #tpu.memory_space<vmem>>, vector<1x1x8x128xf32>,
    %c0_166 = arith.constant 0 : index
    %c19 = arith.constant 19 : index
    %c0_167 = arith.constant 0 : index
    %c0_168 = arith.constant 0 : index
    %232 = vector.load %arg8[%c0_166, %c19, %c0_167, %c0_168] : memref<1x21x8x128xf32, #tpu.memory_space<vmem>>, vector<1x1x8x128xf32>
    %233 = vector.shape_cast %232 : vector<1x1x8x128xf32> to vector<8x128xf32>
    %234 = arith.addf %233, %212 : vector<8x128xf32>
    %c0_169 = arith.constant 0 : index
    %c19_170 = arith.constant 19 : index
    %c0_171 = arith.constant 0 : index
    %c0_172 = arith.constant 0 : index
    %235 = vector.load %arg8[%c0_169, %c19_170, %c0_171, %c0_172] : memref<1x21x8x128xf32, #tpu.memory_space<vmem>>, vector<1x1x8x128xf32>
    %236 = vector.shape_cast %235 : vector<1x1x8x128xf32> to vector<8x128xf32>
    %237 = vector.shape_cast %234 : vector<8x128xf32> to vector<1x1x8x128xf32>
    tpu.vector_store %arg8[%c0_169, %c19_170, %c0_171, %c0_172], %237 {strides = array<i32>} : memref<1x21x8x128xf32, #tpu.memory_space<vmem>>, vector<1x1x8x128xf32>,
    %c0_173 = arith.constant 0 : index
    %c20 = arith.constant 20 : index
    %c0_174 = arith.constant 0 : index
    %c0_175 = arith.constant 0 : index
    %238 = vector.load %arg8[%c0_173, %c20, %c0_174, %c0_175] : memref<1x21x8x128xf32, #tpu.memory_space<vmem>>, vector<1x1x8x128xf32>
    %239 = vector.shape_cast %238 : vector<1x1x8x128xf32> to vector<8x128xf32>
    %240 = arith.mulf %212, %8 : vector<8x128xf32>
    %241 = arith.addf %239, %240 : vector<8x128xf32>
    %c0_176 = arith.constant 0 : index
    %c20_177 = arith.constant 20 : index
    %c0_178 = arith.constant 0 : index
    %c0_179 = arith.constant 0 : index
    %242 = vector.load %arg8[%c0_176, %c20_177, %c0_178, %c0_179] : memref<1x21x8x128xf32, #tpu.memory_space<vmem>>, vector<1x1x8x128xf32>
    %243 = vector.shape_cast %242 : vector<1x1x8x128xf32> to vector<8x128xf32>
    %244 = vector.shape_cast %241 : vector<8x128xf32> to vector<1x1x8x128xf32>
    tpu.vector_store %arg8[%c0_176, %c20_177, %c0_178, %c0_179], %244 {strides = array<i32>} : memref<1x21x8x128xf32, #tpu.memory_space<vmem>>, vector<1x1x8x128xf32>,
    %c1_i32_180 = arith.constant 1 : i32
    return
  }
  func.func @transform_0(%arg0: i32, %arg1: i32) -> (i32, i32) {
    %c1_i32 = arith.constant 1 : i32
    %0 = arith.muli %arg0, %c1_i32 : i32
    %1 = arith.addi %0, %arg1 : i32
    %c0_i32 = arith.constant 0 : i32
    %c0_i32_0 = arith.constant 0 : i32
    return %1, %c0_i32 : i32, i32
  }
  func.func @transform_1(%arg0: i32, %arg1: i32) -> (i32, i32) {
    %c1_i32 = arith.constant 1 : i32
    %0 = arith.muli %arg0, %c1_i32 : i32
    %1 = arith.addi %0, %arg1 : i32
    %c0_i32 = arith.constant 0 : i32
    %c0_i32_0 = arith.constant 0 : i32
    return %1, %c0_i32 : i32, i32
  }
  func.func @transform_2(%arg0: i32, %arg1: i32) -> (i32, i32) {
    %c1_i32 = arith.constant 1 : i32
    %0 = arith.muli %arg0, %c1_i32 : i32
    %1 = arith.addi %0, %arg1 : i32
    %c0_i32 = arith.constant 0 : i32
    %c0_i32_0 = arith.constant 0 : i32
    return %1, %c0_i32 : i32, i32
  }
  func.func @transform_3(%arg0: i32, %arg1: i32) -> (i32, i32) {
    %c1_i32 = arith.constant 1 : i32
    %0 = arith.muli %arg0, %c1_i32 : i32
    %1 = arith.addi %0, %arg1 : i32
    %c0_i32 = arith.constant 0 : i32
    %c0_i32_0 = arith.constant 0 : i32
    return %1, %c0_i32 : i32, i32
  }
  func.func @transform_4(%arg0: i32, %arg1: i32) -> (i32, i32) {
    %c1_i32 = arith.constant 1 : i32
    %0 = arith.muli %arg0, %c1_i32 : i32
    %1 = arith.addi %0, %arg1 : i32
    %c0_i32 = arith.constant 0 : i32
    %c0_i32_0 = arith.constant 0 : i32
    return %1, %c0_i32 : i32, i32
  }
  func.func @transform_5(%arg0: i32, %arg1: i32) -> (i32, i32) {
    %c1_i32 = arith.constant 1 : i32
    %0 = arith.muli %arg0, %c1_i32 : i32
    %1 = arith.addi %0, %arg1 : i32
    %c0_i32 = arith.constant 0 : i32
    %c0_i32_0 = arith.constant 0 : i32
    return %1, %c0_i32 : i32, i32
  }
  func.func @transform_6(%arg0: i32, %arg1: i32) -> (i32, i32, i32, i32) {
    %c0_i32 = arith.constant 0 : i32
    %c0_i32_0 = arith.constant 0 : i32
    %c0_i32_1 = arith.constant 0 : i32
    %c0_i32_2 = arith.constant 0 : i32
    return %arg0, %c0_i32, %c0_i32_0, %c0_i32_1 : i32, i32, i32, i32
  }
}

</mosaic_0001>

<llo_original>
// kernel: tpu_custom_call.1
$region0: #{tpu_custom_call.1}
  #allocation0 [shape = 'u32[]', space=smem, size = 0x4, offset = 0x4, fixed_abs, tag = 'smem constant byte address 0x4 - core index']
  #allocation1 [shape = 'u32[72,128]{1,0:T(1,128)}', space=vmem, size = 0x9000, scoped, tag = 'internal scratch']
  %s0 = inlined_call_operand.hbm [shape: f32[16,128], index: 0, kind: input, shape index: {}]
  %s1 = inlined_call_operand.hbm [shape: f32[16,128], index: 1, kind: input, shape index: {}]
  %s2 = inlined_call_operand.hbm [shape: f32[16,128], index: 2, kind: input, shape index: {}]
  %s3 = inlined_call_operand.hbm [shape: f32[16,128], index: 3, kind: input, shape index: {}]
  %s4 = inlined_call_operand.hbm [shape: f32[16,128], index: 4, kind: input, shape index: {}]
  %s5 = inlined_call_operand.hbm [shape: f32[16,128], index: 5, kind: input, shape index: {}]
  %s6 = inlined_call_operand.hbm [shape: f32[2,21,8,128], index: 6, kind: output, shape index: {}]
  %s7 = sld [smem:[#allocation0]]
  $region85: #{tpu_custom_call.1} parent=0
    _
  %s9 = ssub.s32 1, %s7
  %s10 = scalar_select 0, %s9, %s7
  $region1: #{tpu_custom_call.1} parent=0
    #allocation2 [shape = 'u8[8192]{0}', space=vmem, size = 0x2000, scoped, tag = 'input window, operand 0']
    #allocation3 [shape = 's32[2]{0}', space=sflag, size = 0x8, scoped, tag = 'scoped memory for tpu_custom_call.1']
    #allocation4 [shape = 's32[2]{0}', space=sflag, size = 0x8, scoped, tag = 'scoped memory for tpu_custom_call.1']
    #allocation5 [shape = 'u8[8192]{0}', space=vmem, size = 0x2000, scoped, tag = 'input window, operand 1']
    #allocation6 [shape = 's32[2]{0}', space=sflag, size = 0x8, scoped, tag = 'scoped memory for tpu_custom_call.1']
    #allocation7 [shape = 'u8[8192]{0}', space=vmem, size = 0x2000, scoped, tag = 'input window, operand 2']
    #allocation8 [shape = 'u8[8192]{0}', space=vmem, size = 0x2000, scoped, tag = 'input window, operand 3']
    #allocation9 [shape = 's32[2]{0}', space=sflag, size = 0x8, scoped, tag = 'scoped memory for tpu_custom_call.1']
    #allocation10 [shape = 'u8[8192]{0}', space=vmem, size = 0x2000, scoped, tag = 'input window, operand 4']
    #allocation11 [shape = 'u8[8192]{0}', space=vmem, size = 0x2000, scoped, tag = 'input window, operand 5']
    #allocation12 [shape = 's32[2]{0}', space=sflag, size = 0x8, scoped, tag = 'scoped memory for tpu_custom_call.1']
    #allocation13 [shape = 'u8[172032]{0}', space=vmem, size = 0x2a000, scoped, tag = 'output window, operand 0']
    %11 = vsyncpa [#allocation3], 0
    %s12 = scalar_lea.sflag [#allocation3], 1
    %13 = vsyncpa %s12, 0
    %14 = vsyncpa [#allocation6], 0
    %s15 = scalar_lea.sflag [#allocation6], 1
    %16 = vsyncpa %s15, 0
    %17 = vsyncpa [#allocation9], 0
    %s18 = scalar_lea.sflag [#allocation9], 1
    %19 = vsyncpa %s18, 0
    %20 = vsyncpa [#allocation12], 0
    %s21 = scalar_lea.sflag [#allocation12], 1
    %22 = vsyncpa %s21, 0
    %23 = vsyncpa [#allocation4], 0
    %s24 = scalar_lea.sflag [#allocation4], 1
    %25 = vsyncpa %s24, 0
    loop: start=0, step=1, limit=4
    $region2: #{tpu_custom_call.1} parent=1 // loop_pre_header
      _
    $region3: #{tpu_custom_call.1} parent=1 // loop_header
      %s27 = sphi 0, %s31
      %p28 = scmp.ge.s32.totalorder %s27, 4
      %s34 = sphi 0, %s46
      %s35 = sphi 0, %s42
      %s36 = sphi 0, %s34
      %s37 = sphi 0, %s35
      %s38 = sphi 0, %s36
      %s39 = sphi 0, %s37
      %s51 = sphi 0, %s53
      %s54 = sphi 0, %s51
      %s55 = sphi 0, %s54
      %s71 = sphi 0, %s55
      %s79 = sphi 0, %s81
      %s82 = sphi 0, %s79
      %s83 = sphi 0, %s82
      %s99 = sphi 0, %s83
      %s107 = sphi 0, %s109
      %s110 = sphi 0, %s107
      %s111 = sphi 0, %s110
      %s127 = sphi 0, %s111
      %s135 = sphi 0, %s137
      %s138 = sphi 0, %s135
      %s139 = sphi 0, %s138
      %s155 = sphi 0, %s139
      %s163 = sphi 0, %s165
      %s166 = sphi 0, %s163
      %s167 = sphi 0, %s166
      %s183 = sphi 0, %s167
      %s191 = sphi 0, %s193
      %s194 = sphi 0, %s191
      %s195 = sphi 0, %s194
      %s211 = sphi 0, %s195
      %s217 = sphi 0, %s219
      %s220 = sphi 0, %s217
      %s221 = sphi 0, %s220
      %s237 = sphi 0, %s221
    $region4: #{tpu_custom_call.1} parent=1 // loop_header_branch
      %30 = sbr.rel (%p28) target = $region8
    $region5: #{tpu_custom_call.1} parent=1 // loop_body
      %s32 = ssub.s32 %s27, 1
      %s33 = ssub.s32 %s27, 2
      %s40 = sadd.s32 1, %s35
      %p41 = scmp.ge.s32.totalorder %s40, 1
      %s42 = scalar_select %p41, 0, %s40
      %s43 = sadd.s32 1, %s34
      %s44 = scalar_select %p41, %s43, %s34
      %p45 = scmp.ge.s32.totalorder %s44, 2
      %s46 = scalar_select %p45, 0, %s44
      %s47 = sadd.s32 %s34, %s35
      %s48 = sadd.s32 %s46, %s42
      %s49 = ssub.s32 %s47, %s48
      %p50 = scmp.eq.s32.totalorder %s49, 0
      %s52 = sadd.s32 %s51, 1
      %s53 = scalar_select %p50, %s51, %s52
      %p56 = pneg %p50
      %p57 = scmp.eq.s32.totalorder %s27, 1
      %p58 = por %p56, %p57
      %p59 = scmp.ne.s32.totalorder %s51, %s54
      %p60 = scmp.eq.s32.totalorder %s27, 0
      %p61 = por %p59, %p60
      %p62 = scmp.ne.s32.totalorder %s51, %s54
      %p63 = scmp.eq.s32.totalorder %s32, 1
      %p64 = por %p62, %p63
      %p65 = scmp.ne.s32.totalorder %s54, %s55
      %p66 = scmp.eq.s32.totalorder %s32, 0
      %p67 = por %p65, %p66
      %p68 = scmp.ne.s32.totalorder %s54, %s55
      %p69 = scmp.eq.s32.totalorder %s33, 1
      %p70 = por %p68, %p69
      %p72 = scmp.ne.s32.totalorder %s55, %s71
      %p73 = scmp.eq.s32.totalorder %s33, 0
      %p74 = por %p72, %p73
      %s75 = sadd.s32 %s34, %s35
      %s76 = sadd.s32 %s46, %s42
      %s77 = ssub.s32 %s75, %s76
      %p78 = scmp.eq.s32.totalorder %s77, 0
      %s80 = sadd.s32 %s79, 1
      %s81 = scalar_select %p78, %s79, %s80
      %p84 = pneg %p78
      %p85 = scmp.eq.s32.totalorder %s27, 1
      %p86 = por %p84, %p85
      %p87 = scmp.ne.s32.totalorder %s79, %s82
      %p88 = scmp.eq.s32.totalorder %s27, 0
      %p89 = por %p87, %p88
      %p90 = scmp.ne.s32.totalorder %s79, %s82
      %p91 = scmp.eq.s32.totalorder %s32, 1
      %p92 = por %p90, %p91
      %p93 = scmp.ne.s32.totalorder %s82, %s83
      %p94 = scmp.eq.s32.totalorder %s32, 0
      %p95 = por %p93, %p94
      %p96 = scmp.ne.s32.totalorder %s82, %s83
      %p97 = scmp.eq.s32.totalorder %s33, 1
      %p98 = por %p96, %p97
      %p100 = scmp.ne.s32.totalorder %s83, %s99
      %p101 = scmp.eq.s32.totalorder %s33, 0
      %p102 = por %p100, %p101
      %s103 = sadd.s32 %s34, %s35
      %s104 = sadd.s32 %s46, %s42
      %s105 = ssub.s32 %s103, %s104
      %p106 = scmp.eq.s32.totalorder %s105, 0
      %s108 = sadd.s32 %s107, 1
      %s109 = scalar_select %p106, %s107, %s108
      %p112 = pneg %p106
      %p113 = scmp.eq.s32.totalorder %s27, 1
      %p114 = por %p112, %p113
      %p115 = scmp.ne.s32.totalorder %s107, %s110
      %p116 = scmp.eq.s32.totalorder %s27, 0
      %p117 = por %p115, %p116
      %p118 = scmp.ne.s32.totalorder %s107, %s110
      %p119 = scmp.eq.s32.totalorder %s32, 1
      %p120 = por %p118, %p119
      %p121 = scmp.ne.s32.totalorder %s110, %s111
      %p122 = scmp.eq.s32.totalorder %s32, 0
      %p123 = por %p121, %p122
      %p124 = scmp.ne.s32.totalorder %s110, %s111
      %p125 = scmp.eq.s32.totalorder %s33, 1
      %p126 = por %p124, %p125
      %p128 = scmp.ne.s32.totalorder %s111, %s127
      %p129 = scmp.eq.s32.totalorder %s33, 0
      %p130 = por %p128, %p129
      %s131 = sadd.s32 %s34, %s35
      %s132 = sadd.s32 %s46, %s42
      %s133 = ssub.s32 %s131, %s132
      %p134 = scmp.eq.s32.totalorder %s133, 0
      %s136 = sadd.s32 %s135, 1
      %s137 = scalar_select %p134, %s135, %s136
      %p140 = pneg %p134
      %p141 = scmp.eq.s32.totalorder %s27, 1
      %p142 = por %p140, %p141
      %p143 = scmp.ne.s32.totalorder %s135, %s138
      %p144 = scmp.eq.s32.totalorder %s27, 0
      %p145 = por %p143, %p144
      %p146 = scmp.ne.s32.totalorder %s135, %s138
      %p147 = scmp.eq.s32.totalorder %s32, 1
      %p148 = por %p146, %p147
      %p149 = scmp.ne.s32.totalorder %s138, %s139
      %p150 = scmp.eq.s32.totalorder %s32, 0
      %p151 = por %p149, %p150
      %p152 = scmp.ne.s32.totalorder %s138, %s139
      %p153 = scmp.eq.s32.totalorder %s33, 1
      %p154 = por %p152, %p153
      %p156 = scmp.ne.s32.totalorder %s139, %s155
      %p157 = scmp.eq.s32.totalorder %s33, 0
      %p158 = por %p156, %p157
      %s159 = sadd.s32 %s34, %s35
      %s160 = sadd.s32 %s46, %s42
      %s161 = ssub.s32 %s159, %s160
      %p162 = scmp.eq.s32.totalorder %s161, 0
      %s164 = sadd.s32 %s163, 1
      %s165 = scalar_select %p162, %s163, %s164
      %p168 = pneg %p162
      %p169 = scmp.eq.s32.totalorder %s27, 1
      %p170 = por %p168, %p169
      %p171 = scmp.ne.s32.totalorder %s163, %s166
      %p172 = scmp.eq.s32.totalorder %s27, 0
      %p173 = por %p171, %p172
      %p174 = scmp.ne.s32.totalorder %s163, %s166
      %p175 = scmp.eq.s32.totalorder %s32, 1
      %p176 = por %p174, %p175
      %p177 = scmp.ne.s32.totalorder %s166, %s167
      %p178 = scmp.eq.s32.totalorder %s32, 0
      %p179 = por %p177, %p178
      %p180 = scmp.ne.s32.totalorder %s166, %s167
      %p181 = scmp.eq.s32.totalorder %s33, 1
      %p182 = por %p180, %p181
      %p184 = scmp.ne.s32.totalorder %s167, %s183
      %p185 = scmp.eq.s32.totalorder %s33, 0
      %p186 = por %p184, %p185
      %s187 = sadd.s32 %s34, %s35
      %s188 = sadd.s32 %s46, %s42
      %s189 = ssub.s32 %s187, %s188
      %p190 = scmp.eq.s32.totalorder %s189, 0
      %s192 = sadd.s32 %s191, 1
      %s193 = scalar_select %p190, %s191, %s192
      %p196 = pneg %p190
      %p197 = scmp.eq.s32.totalorder %s27, 1
      %p198 = por %p196, %p197
      %p199 = scmp.ne.s32.totalorder %s191, %s194
      %p200 = scmp.eq.s32.totalorder %s27, 0
      %p201 = por %p199, %p200
      %p202 = scmp.ne.s32.totalorder %s191, %s194
      %p203 = scmp.eq.s32.totalorder %s32, 1
      %p204 = por %p202, %p203
      %p205 = scmp.ne.s32.totalorder %s194, %s195
      %p206 = scmp.eq.s32.totalorder %s32, 0
      %p207 = por %p205, %p206
      %p208 = scmp.ne.s32.totalorder %s194, %s195
      %p209 = scmp.eq.s32.totalorder %s33, 1
      %p210 = por %p208, %p209
      %p212 = scmp.ne.s32.totalorder %s195, %s211
      %p213 = scmp.eq.s32.totalorder %s33, 0
      %p214 = por %p212, %p213
      %s215 = ssub.s32 %s34, %s46
      %p216 = scmp.eq.s32.totalorder %s215, 0
      %s218 = sadd.s32 %s217, 1
      %s219 = scalar_select %p216, %s217, %s218
      %p222 = pneg %p216
      %p223 = scmp.eq.s32.totalorder %s27, 1
      %p224 = por %p222, %p223
      %p225 = scmp.ne.s32.totalorder %s217, %s220
      %p226 = scmp.eq.s32.totalorder %s27, 0
      %p227 = por %p225, %p226
      %p228 = scmp.ne.s32.totalorder %s217, %s220
      %p229 = scmp.eq.s32.totalorder %s32, 1
      %p230 = por %p228, %p229
      %p231 = scmp.ne.s32.totalorder %s220, %s221
      %p232 = scmp.eq.s32.totalorder %s32, 0
      %p233 = por %p231, %p232
      %p234 = scmp.ne.s32.totalorder %s220, %s221
      %p235 = scmp.eq.s32.totalorder %s33, 1
      %p236 = por %p234, %p235
      %p238 = scmp.ne.s32.totalorder %s221, %s237
      %p239 = scmp.eq.s32.totalorder %s33, 0
      %p240 = por %p238, %p239
      %p241 = scmp.le.s32.totalorder 1, %s27
      %p242 = scmp.lt.s32.totalorder %s27, 3
      %p243 = pnand %p241, %p242
      %p244 = pneg %p243
      // Predicated region
      $region9: #{tpu_custom_call.1} parent=5 // pred_check
        _
      $region10: #{tpu_custom_call.1} parent=5 // pred_check_branch
        %246 = sbr.rel (%p243) target = $region12
      $region11: #{tpu_custom_call.1} parent=5 // pred_region
        %s247 = ssub.s32 %s27, 1
      $region12: #{tpu_custom_call.1} parent=5 // pred_fallthru
        _
      %p248 = scmp.lt.s32.totalorder %s27, 2
      // Predicated region
      $region13: #{tpu_custom_call.1} parent=5 // pred_check
        %p249 = pneg %p248
      $region14: #{tpu_custom_call.1} parent=5 // pred_check_branch
        %251 = sbr.rel (%p249) target = $region16
      $region15: #{tpu_custom_call.1} parent=5 // pred_region
        // Predicated region
        $region17: #{tpu_custom_call.1} parent=15 // pred_check
          %p252 = pneg %p61
        $region18: #{tpu_custom_call.1} parent=15 // pred_check_branch
          %254 = sbr.rel (%p252) target = $region20
        $region19: #{tpu_custom_call.1} parent=15 // pred_region
          %s255 = sand.u32 %s51, 1
          %s256 = scalar_lea.sflag [#allocation3], %s255
          %s257 = sand.u32 %s51, 1
          %s258 = smul.addr %s257, 8
          %s259 = scalar_lea.vmem [#allocation2], %s258
          %s260 = sadd.s32 %s34, %s35
          %262 = vsyncadd %s256, 0
          %s263 = smul.addr %s260, 8
          %s264 = scalar_lea.hbm %s0, %s263
          %s266 = sshll.u32 %s264, 4
          %s267 = int_to_ptr.hbm [resolvable:$true] %s266
          %s268 = sshll.u32 %s259, 4
          %s269 = int_to_ptr.vmem [resolvable:$true] %s268
          %271 = dma.hbm_to_vmem [thread:$0]  %s267, 128, %s269, %s256
        $region20: #{tpu_custom_call.1} parent=15 // pred_fallthru
          _
        // Predicated region
        $region21: #{tpu_custom_call.1} parent=15 // pred_check
          %p272 = pneg %p89
        $region22: #{tpu_custom_call.1} parent=15 // pred_check_branch
          %274 = sbr.rel (%p272) target = $region24
        $region23: #{tpu_custom_call.1} parent=15 // pred_region
          %s275 = sand.u32 %s27, 1
          %s276 = scalar_lea.sflag [#allocation6], %s275
          %s277 = sand.u32 %s79, 1
          %s278 = smul.addr %s277, 8
          %s279 = scalar_lea.vmem [#allocation5], %s278
          %s280 = sadd.s32 %s34, %s35
          %282 = vsyncadd %s276, 0
          %s283 = smul.addr %s280, 8
          %s284 = scalar_lea.hbm %s1, %s283
          %s286 = sshll.u32 %s284, 4
          %s287 = int_to_ptr.hbm [resolvable:$true] %s286
          %s288 = sshll.u32 %s279, 4
          %s289 = int_to_ptr.vmem [resolvable:$true] %s288
          %291 = dma.hbm_to_vmem [thread:$0]  %s287, 128, %s289, %s276
        $region24: #{tpu_custom_call.1} parent=15 // pred_fallthru
          _
        // Predicated region
        $region25: #{tpu_custom_call.1} parent=15 // pred_check
          %p292 = pneg %p117
        $region26: #{tpu_custom_call.1} parent=15 // pred_check_branch
          %294 = sbr.rel (%p292) target = $region28
        $region27: #{tpu_custom_call.1} parent=15 // pred_region
          %s295 = sand.u32 %s27, 1
          %s296 = scalar_lea.sflag [#allocation6], %s295
          %s297 = sand.u32 %s107, 1
          %s298 = smul.addr %s297, 8
          %s299 = scalar_lea.vmem [#allocation7], %s298
          %s300 = sadd.s32 %s34, %s35
          %302 = vsyncadd %s296, 0
          %s303 = smul.addr %s300, 8
          %s304 = scalar_lea.hbm %s2, %s303
          %s306 = sshll.u32 %s304, 4
          %s307 = int_to_ptr.hbm [resolvable:$true] %s306
          %s308 = sshll.u32 %s299, 4
          %s309 = int_to_ptr.vmem [resolvable:$true] %s308
          %311 = dma.hbm_to_vmem [thread:$0]  %s307, 128, %s309, %s296
        $region28: #{tpu_custom_call.1} parent=15 // pred_fallthru
          _
        // Predicated region
        $region29: #{tpu_custom_call.1} parent=15 // pred_check
          %p312 = pneg %p145
        $region30: #{tpu_custom_call.1} parent=15 // pred_check_branch
          %314 = sbr.rel (%p312) target = $region32
        $region31: #{tpu_custom_call.1} parent=15 // pred_region
          %s315 = sand.u32 %s27, 1
          %s316 = scalar_lea.sflag [#allocation9], %s315
          %s317 = sand.u32 %s135, 1
          %s318 = smul.addr %s317, 8
          %s319 = scalar_lea.vmem [#allocation8], %s318
          %s320 = sadd.s32 %s34, %s35
          %322 = vsyncadd %s316, 0
          %s323 = smul.addr %s320, 8
          %s324 = scalar_lea.hbm %s3, %s323
          %s326 = sshll.u32 %s324, 4
          %s327 = int_to_ptr.hbm [resolvable:$true] %s326
          %s328 = sshll.u32 %s319, 4
          %s329 = int_to_ptr.vmem [resolvable:$true] %s328
          %331 = dma.hbm_to_vmem [thread:$0]  %s327, 128, %s329, %s316
        $region32: #{tpu_custom_call.1} parent=15 // pred_fallthru
          _
        // Predicated region
        $region33: #{tpu_custom_call.1} parent=15 // pred_check
          %p332 = pneg %p173
        $region34: #{tpu_custom_call.1} parent=15 // pred_check_branch
          %334 = sbr.rel (%p332) target = $region36
        $region35: #{tpu_custom_call.1} parent=15 // pred_region
          %s335 = sand.u32 %s27, 1
          %s336 = scalar_lea.sflag [#allocation9], %s335
          %s337 = sand.u32 %s163, 1
          %s338 = smul.addr %s337, 8
          %s339 = scalar_lea.vmem [#allocation10], %s338
          %s340 = sadd.s32 %s34, %s35
          %342 = vsyncadd %s336, 0
          %s343 = smul.addr %s340, 8
          %s344 = scalar_lea.hbm %s4, %s343
          %s346 = sshll.u32 %s344, 4
          %s347 = int_to_ptr.hbm [resolvable:$true] %s346
          %s348 = sshll.u32 %s339, 4
          %s349 = int_to_ptr.vmem [resolvable:$true] %s348
          %351 = dma.hbm_to_vmem [thread:$0]  %s347, 128, %s349, %s336
        $region36: #{tpu_custom_call.1} parent=15 // pred_fallthru
          _
        // Predicated region
        $region37: #{tpu_custom_call.1} parent=15 // pred_check
          %p352 = pneg %p201
        $region38: #{tpu_custom_call.1} parent=15 // pred_check_branch
          %354 = sbr.rel (%p352) target = $region40
        $region39: #{tpu_custom_call.1} parent=15 // pred_region
          %s355 = sand.u32 %s191, 1
          %s356 = scalar_lea.sflag [#allocation12], %s355
          %s357 = sand.u32 %s191, 1
          %s358 = smul.addr %s357, 8
          %s359 = scalar_lea.vmem [#allocation11], %s358
          %s360 = sadd.s32 %s34, %s35
          %362 = vsyncadd %s356, 0
          %s363 = smul.addr %s360, 8
          %s364 = scalar_lea.hbm %s5, %s363
          %s366 = sshll.u32 %s364, 4
          %s367 = int_to_ptr.hbm [resolvable:$true] %s366
          %s368 = sshll.u32 %s359, 4
          %s369 = int_to_ptr.vmem [resolvable:$true] %s368
          %371 = dma.hbm_to_vmem [thread:$0]  %s367, 128, %s369, %s356
        $region40: #{tpu_custom_call.1} parent=15 // pred_fallthru
          _
      $region16: #{tpu_custom_call.1} parent=5 // pred_fallthru
        _
      %p372 = scmp.le.s32.totalorder 1, %s27
      %p373 = scmp.lt.s32.totalorder %s27, 3
      %p374 = pnand %p372, %p373
      %p375 = pneg %p374
      // Predicated region
      $region41: #{tpu_custom_call.1} parent=5 // pred_check
        _
      $region42: #{tpu_custom_call.1} parent=5 // pred_check_branch
        %377 = sbr.rel (%p374) target = $region44
      $region43: #{tpu_custom_call.1} parent=5 // pred_region
        %s378 = ssub.s32 %s27, 1
        %s379 = sand.u32 %s54, 1
        %s380 = scalar_lea.sflag [#allocation3], %s379
        %s381 = sand.u32 %s54, 1
        %s382 = smul.addr %s381, 8
        %s383 = scalar_lea.vmem [#allocation2], %s382
        // Predicated region
        $region45: #{tpu_custom_call.1} parent=43 // pred_check
          %p384 = pneg %p67
        $region46: #{tpu_custom_call.1} parent=43 // pred_check_branch
          %386 = sbr.rel (%p384) target = $region48
        $region47: #{tpu_custom_call.1} parent=43 // pred_region
          %388 = dma.done %s380, 128
        $region48: #{tpu_custom_call.1} parent=43 // pred_fallthru
          _
        %s389 = sand.u32 %s32, 1
        %s390 = scalar_lea.sflag [#allocation6], %s389
        %s391 = sand.u32 %s82, 1
        %s392 = smul.addr %s391, 8
        %s393 = scalar_lea.vmem [#allocation5], %s392
        // Predicated region
        $region49: #{tpu_custom_call.1} parent=43 // pred_check
          %p394 = pneg %p95
        $region50: #{tpu_custom_call.1} parent=43 // pred_check_branch
          %396 = sbr.rel (%p394) target = $region52
        $region51: #{tpu_custom_call.1} parent=43 // pred_region
          %398 = dma.done %s390, 128
        $region52: #{tpu_custom_call.1} parent=43 // pred_fallthru
          _
        %s399 = sand.u32 %s32, 1
        %s400 = scalar_lea.sflag [#allocation6], %s399
        %s401 = sand.u32 %s110, 1
        %s402 = smul.addr %s401, 8
        %s403 = scalar_lea.vmem [#allocation7], %s402
        // Predicated region
        $region53: #{tpu_custom_call.1} parent=43 // pred_check
          %p404 = pneg %p123
        $region54: #{tpu_custom_call.1} parent=43 // pred_check_branch
          %406 = sbr.rel (%p404) target = $region56
        $region55: #{tpu_custom_call.1} parent=43 // pred_region
          %408 = dma.done %s400, 128
        $region56: #{tpu_custom_call.1} parent=43 // pred_fallthru
          _
        %s409 = sand.u32 %s32, 1
        %s410 = scalar_lea.sflag [#allocation9], %s409
        %s411 = sand.u32 %s138, 1
        %s412 = smul.addr %s411, 8
        %s413 = scalar_lea.vmem [#allocation8], %s412
        // Predicated region
        $region57: #{tpu_custom_call.1} parent=43 // pred_check
          %p414 = pneg %p151
        $region58: #{tpu_custom_call.1} parent=43 // pred_check_branch
          %416 = sbr.rel (%p414) target = $region60
        $region59: #{tpu_custom_call.1} parent=43 // pred_region
          %418 = dma.done %s410, 128
        $region60: #{tpu_custom_call.1} parent=43 // pred_fallthru
          _
        %s419 = sand.u32 %s32, 1
        %s420 = scalar_lea.sflag [#allocation9], %s419
        %s421 = sand.u32 %s166, 1
        %s422 = smul.addr %s421, 8
        %s423 = scalar_lea.vmem [#allocation10], %s422
        // Predicated region
        $region61: #{tpu_custom_call.1} parent=43 // pred_check
          %p424 = pneg %p179
        $region62: #{tpu_custom_call.1} parent=43 // pred_check_branch
          %426 = sbr.rel (%p424) target = $region64
        $region63: #{tpu_custom_call.1} parent=43 // pred_region
          %428 = dma.done %s420, 128
        $region64: #{tpu_custom_call.1} parent=43 // pred_fallthru
          _
        %s429 = sand.u32 %s194, 1
        %s430 = scalar_lea.sflag [#allocation12], %s429
        %s431 = sand.u32 %s194, 1
        %s432 = smul.addr %s431, 8
        %s433 = scalar_lea.vmem [#allocation11], %s432
        // Predicated region
        $region65: #{tpu_custom_call.1} parent=43 // pred_check
          %p434 = pneg %p207
        $region66: #{tpu_custom_call.1} parent=43 // pred_check_branch
          %436 = sbr.rel (%p434) target = $region68
        $region67: #{tpu_custom_call.1} parent=43 // pred_region
          %438 = dma.done %s430, 128
        $region68: #{tpu_custom_call.1} parent=43 // pred_fallthru
          _
        %s439 = sand.u32 %s54, 1
        %s440 = scalar_lea.sflag [#allocation3], %s439
        %s441 = sand.u32 %s54, 1
        %s442 = smul.addr %s441, 8
        %s443 = scalar_lea.vmem [#allocation2], %s442
        %p444 = pneg %p67
        %p445 = pneg %p64
        %s446 = sand.u32 %s32, 1
        %s447 = scalar_lea.sflag [#allocation6], %s446
        %s448 = sand.u32 %s82, 1
        %s449 = smul.addr %s448, 8
        %s450 = scalar_lea.vmem [#allocation5], %s449
        %p451 = pneg %p95
        %p452 = pneg %p92
        %s453 = sand.u32 %s32, 1
        %s454 = scalar_lea.sflag [#allocation6], %s453
        %s455 = sand.u32 %s110, 1
        %s456 = smul.addr %s455, 8
        %s457 = scalar_lea.vmem [#allocation7], %s456
        %p458 = pneg %p123
        %p459 = pneg %p120
        %s460 = sand.u32 %s32, 1
        %s461 = scalar_lea.sflag [#allocation9], %s460
        %s462 = sand.u32 %s138, 1
        %s463 = smul.addr %s462, 8
        %s464 = scalar_lea.vmem [#allocation8], %s463
        %p465 = pneg %p151
        %p466 = pneg %p148
        %s467 = sand.u32 %s32, 1
        %s468 = scalar_lea.sflag [#allocation9], %s467
        %s469 = sand.u32 %s166, 1
        %s470 = smul.addr %s469, 8
        %s471 = scalar_lea.vmem [#allocation10], %s470
        %p472 = pneg %p179
        %p473 = pneg %p176
        %s474 = sand.u32 %s194, 1
        %s475 = scalar_lea.sflag [#allocation12], %s474
        %s476 = sand.u32 %s194, 1
        %s477 = smul.addr %s476, 8
        %s478 = scalar_lea.vmem [#allocation11], %s477
        %p479 = pneg %p207
        %p480 = pneg %p204
        %p481 = pneg %p233
        %p482 = pneg %p230
        %s483 = sand.u32 %s220, 1
        %s484 = scalar_lea.sflag [#allocation4], %s483
        %s485 = sand.u32 %s220, 1
        %s486 = smul.addr %s485, 168
        %s487 = scalar_lea.vmem [#allocation13], %s486
        %s488 = sadd.s32 %s36, %s37
        %s489 = sadd.s32 %s36, %s37
        %s490 = sadd.s32 %s36, %s37
        %s491 = sadd.s32 %s36, %s37
        %s492 = sadd.s32 %s36, %s37
        %s493 = sadd.s32 %s36, %s37
        %p494 = scmp.eq.s32.totalorder %s37, 0
        // Predicated region
        $region69: #{tpu_custom_call.1} parent=43 // pred_check
          %p495 = pneg %p494
        $region70: #{tpu_custom_call.1} parent=43 // pred_check_branch
          %497 = sbr.rel (%p495) target = $region72
        $region71: #{tpu_custom_call.1} parent=43 // pred_region
          %498 = vst [vmem:[%s487] sm:$0xff] 0.0
          %499 = vst [vmem:[%s487 + $0x8] sm:$0xff] 0.0
          %500 = vst [vmem:[%s487 + $0x10] sm:$0xff] 0.0
          %501 = vst [vmem:[%s487 + $0x18] sm:$0xff] 0.0
          %502 = vst [vmem:[%s487 + $0x20] sm:$0xff] 0.0
          %503 = vst [vmem:[%s487 + $0x28] sm:$0xff] 0.0
          %504 = vst [vmem:[%s487 + $0x30] sm:$0xff] 0.0
          %505 = vst [vmem:[%s487 + $0x38] sm:$0xff] 0.0
          %506 = vst [vmem:[%s487 + $0x40] sm:$0xff] 0.0
          %507 = vst [vmem:[%s487 + $0x48] sm:$0xff] 0.0
          %508 = vst [vmem:[%s487 + $0x50] sm:$0xff] 0.0
          %509 = vst [vmem:[%s487 + $0x58] sm:$0xff] 0.0
          %510 = vst [vmem:[%s487 + $0x60] sm:$0xff] 0.0
          %511 = vst [vmem:[%s487 + $0x68] sm:$0xff] 0.0
          %512 = vst [vmem:[%s487 + $0x70] sm:$0xff] 0.0
          %513 = vst [vmem:[%s487 + $0x78] sm:$0xff] 0.0
          %514 = vst [vmem:[%s487 + $0x80] sm:$0xff] 0.0
          %515 = vst [vmem:[%s487 + $0x88] sm:$0xff] 0.0
          %516 = vst [vmem:[%s487 + $0x90] sm:$0xff] 0.0
          %517 = vst [vmem:[%s487 + $0x98] sm:$0xff] 0.0
          %518 = vst [vmem:[%s487 + $0xa0] sm:$0xff] 0.0
        $region72: #{tpu_custom_call.1} parent=43 // pred_fallthru
          _
        %v519 = vld [vmem:[%s433] sm:$0xff]
        %v520 = vld [vmem:[%s487] sm:$0xff]
        %v521 = vadd.f32 %v520, %v519
        %522 = vst [vmem:[%s487] sm:$0xff] %v521
        %v523 = vld [vmem:[%s383] sm:$0xff]
        %v524 = vand.u32 2147483647, %v523
        %v525 = vsub.f32 0.0, %v524
        %v526 = vmul.f32 %v525, 1.442695
        %v527 = vpow.pop %v526
        %v528 = vadd.f32 %v527, 1.0
        %v529 = vrcp.pop %v528
        %vm530 = vcmp.ge.f32.partialorder %v523, 0.0
        %v531 = vsel %vm530, 1.0, %v527
        %v532 = vmul.f32 %v531, %v529
        %v533 = vmax.f32 %v523, 0.0
        %v534 = vmul.f32 %v523, %v519
        %v535 = vsub.f32 %v533, %v534
        %v536 = vlog2.pop %v528
        %v537 = vmul.f32 %v536, 0.6931472
        %v538 = vadd.f32 %v535, %v537
        %s539 = scalar_lea.vmem %s487, 8 [#allocation13]
        %v540 = vld [vmem:[%s539] sm:$0xff]
        %v541 = vadd.f32 %v540, %v538
        %542 = vst [vmem:[%s539] sm:$0xff] %v541
        %s543 = scalar_lea.vmem %s487, 16 [#allocation13]
        %v544 = vld [vmem:[%s543] sm:$0xff]
        %v545 = vmul.f32 %v538, %v519
        %v546 = vadd.f32 %v544, %v545
        %547 = vst [vmem:[%s543] sm:$0xff] %v546
        %s548 = scalar_lea.vmem %s487, 24 [#allocation13]
        %v549 = vld [vmem:[%s548] sm:$0xff]
        %v550 = vadd.f32 %v549, %v532
        %551 = vst [vmem:[%s548] sm:$0xff] %v550
        %s552 = scalar_lea.vmem %s487, 32 [#allocation13]
        %v553 = vld [vmem:[%s552] sm:$0xff]
        %v554 = vmul.f32 %v532, %v519
        %v555 = vadd.f32 %v553, %v554
        %556 = vst [vmem:[%s552] sm:$0xff] %v555
        %v557 = vld [vmem:[%s393] sm:$0xff]
        %v558 = vand.u32 2147483647, %v557
        %v559 = vsub.f32 0.0, %v558
        %v560 = vmul.f32 %v559, 1.442695
        %v561 = vpow.pop %v560
        %v562 = vadd.f32 %v561, 1.0
        %v563 = vrcp.pop %v562
        %vm564 = vcmp.ge.f32.partialorder %v557, 0.0
        %v565 = vsel %vm564, 1.0, %v561
        %v566 = vmul.f32 %v565, %v563
        %v567 = vmax.f32 %v557, 0.0
        %v568 = vmul.f32 %v557, %v519
        %v569 = vsub.f32 %v567, %v568
        %v570 = vlog2.pop %v562
        %v571 = vmul.f32 %v570, 0.6931472
        %v572 = vadd.f32 %v569, %v571
        %s573 = scalar_lea.vmem %s487, 40 [#allocation13]
        %v574 = vld [vmem:[%s573] sm:$0xff]
        %v575 = vadd.f32 %v574, %v572
        %576 = vst [vmem:[%s573] sm:$0xff] %v575
        %s577 = scalar_lea.vmem %s487, 48 [#allocation13]
        %v578 = vld [vmem:[%s577] sm:$0xff]
        %v579 = vmul.f32 %v572, %v519
        %v580 = vadd.f32 %v578, %v579
        %581 = vst [vmem:[%s577] sm:$0xff] %v580
        %s582 = scalar_lea.vmem %s487, 56 [#allocation13]
        %v583 = vld [vmem:[%s582] sm:$0xff]
        %v584 = vadd.f32 %v583, %v566
        %585 = vst [vmem:[%s582] sm:$0xff] %v584
        %s586 = scalar_lea.vmem %s487, 64 [#allocation13]
        %v587 = vld [vmem:[%s586] sm:$0xff]
        %v588 = vmul.f32 %v566, %v519
        %v589 = vadd.f32 %v587, %v588
        %590 = vst [vmem:[%s586] sm:$0xff] %v589
        %v591 = vld [vmem:[%s403] sm:$0xff]
        %v592 = vand.u32 2147483647, %v591
        %v593 = vsub.f32 0.0, %v592
        %v594 = vmul.f32 %v593, 1.442695
        %v595 = vpow.pop %v594
        %v596 = vadd.f32 %v595, 1.0
        %v597 = vrcp.pop %v596
        %vm598 = vcmp.ge.f32.partialorder %v591, 0.0
        %v599 = vsel %vm598, 1.0, %v595
        %v600 = vmul.f32 %v599, %v597
        %v601 = vmax.f32 %v591, 0.0
        %v602 = vmul.f32 %v591, %v519
        %v603 = vsub.f32 %v601, %v602
        %v604 = vlog2.pop %v596
        %v605 = vmul.f32 %v604, 0.6931472
        %v606 = vadd.f32 %v603, %v605
        %s607 = scalar_lea.vmem %s487, 72 [#allocation13]
        %v608 = vld [vmem:[%s607] sm:$0xff]
        %v609 = vadd.f32 %v608, %v606
        %610 = vst [vmem:[%s607] sm:$0xff] %v609
        %s611 = scalar_lea.vmem %s487, 80 [#allocation13]
        %v612 = vld [vmem:[%s611] sm:$0xff]
        %v613 = vmul.f32 %v606, %v519
        %v614 = vadd.f32 %v612, %v613
        %615 = vst [vmem:[%s611] sm:$0xff] %v614
        %s616 = scalar_lea.vmem %s487, 88 [#allocation13]
        %v617 = vld [vmem:[%s616] sm:$0xff]
        %v618 = vadd.f32 %v617, %v600
        %619 = vst [vmem:[%s616] sm:$0xff] %v618
        %s620 = scalar_lea.vmem %s487, 96 [#allocation13]
        %v621 = vld [vmem:[%s620] sm:$0xff]
        %v622 = vmul.f32 %v600, %v519
        %v623 = vadd.f32 %v621, %v622
        %624 = vst [vmem:[%s620] sm:$0xff] %v623
        %v625 = vld [vmem:[%s413] sm:$0xff]
        %v626 = vand.u32 2147483647, %v625
        %v627 = vsub.f32 0.0, %v626
        %v628 = vmul.f32 %v627, 1.442695
        %v629 = vpow.pop %v628
        %v630 = vadd.f32 %v629, 1.0
        %v631 = vrcp.pop %v630
        %vm632 = vcmp.ge.f32.partialorder %v625, 0.0
        %v633 = vsel %vm632, 1.0, %v629
        %v634 = vmul.f32 %v633, %v631
        %v635 = vmax.f32 %v625, 0.0
        %v636 = vmul.f32 %v625, %v519
        %v637 = vsub.f32 %v635, %v636
        %v638 = vlog2.pop %v630
        %v639 = vmul.f32 %v638, 0.6931472
        %v640 = vadd.f32 %v637, %v639
        %s641 = scalar_lea.vmem %s487, 104 [#allocation13]
        %v642 = vld [vmem:[%s641] sm:$0xff]
        %v643 = vadd.f32 %v642, %v640
        %644 = vst [vmem:[%s641] sm:$0xff] %v643
        %s645 = scalar_lea.vmem %s487, 112 [#allocation13]
        %v646 = vld [vmem:[%s645] sm:$0xff]
        %v647 = vmul.f32 %v640, %v519
        %v648 = vadd.f32 %v646, %v647
        %649 = vst [vmem:[%s645] sm:$0xff] %v648
        %s650 = scalar_lea.vmem %s487, 120 [#allocation13]
        %v651 = vld [vmem:[%s650] sm:$0xff]
        %v652 = vadd.f32 %v651, %v634
        %653 = vst [vmem:[%s650] sm:$0xff] %v652
        %s654 = scalar_lea.vmem %s487, 128 [#allocation13]
        %v655 = vld [vmem:[%s654] sm:$0xff]
        %v656 = vmul.f32 %v634, %v519
        %v657 = vadd.f32 %v655, %v656
        %658 = vst [vmem:[%s654] sm:$0xff] %v657
        %v659 = vld [vmem:[%s423] sm:$0xff]
        %v660 = vand.u32 2147483647, %v659
        %v661 = vsub.f32 0.0, %v660
        %v662 = vmul.f32 %v661, 1.442695
        %v663 = vpow.pop %v662
        %v664 = vadd.f32 %v663, 1.0
        %v665 = vrcp.pop %v664
        %vm666 = vcmp.ge.f32.partialorder %v659, 0.0
        %v667 = vsel %vm666, 1.0, %v663
        %v668 = vmul.f32 %v667, %v665
        %v669 = vmax.f32 %v659, 0.0
        %v670 = vmul.f32 %v659, %v519
        %v671 = vsub.f32 %v669, %v670
        %v672 = vlog2.pop %v664
        %v673 = vmul.f32 %v672, 0.6931472
        %v674 = vadd.f32 %v671, %v673
        %s675 = scalar_lea.vmem %s487, 136 [#allocation13]
        %v676 = vld [vmem:[%s675] sm:$0xff]
        %v677 = vadd.f32 %v676, %v674
        %678 = vst [vmem:[%s675] sm:$0xff] %v677
        %s679 = scalar_lea.vmem %s487, 144 [#allocation13]
        %v680 = vld [vmem:[%s679] sm:$0xff]
        %v681 = vmul.f32 %v674, %v519
        %v682 = vadd.f32 %v680, %v681
        %683 = vst [vmem:[%s679] sm:$0xff] %v682
        %s684 = scalar_lea.vmem %s487, 152 [#allocation13]
        %v685 = vld [vmem:[%s684] sm:$0xff]
        %v686 = vadd.f32 %v685, %v668
        %687 = vst [vmem:[%s684] sm:$0xff] %v686
        %s688 = scalar_lea.vmem %s487, 160 [#allocation13]
        %v689 = vld [vmem:[%s688] sm:$0xff]
        %v690 = vmul.f32 %v668, %v519
        %v691 = vadd.f32 %v689, %v690
        %692 = vst [vmem:[%s688] sm:$0xff] %v691
        %s693 = sand.u32 %s220, 1
        %s694 = scalar_lea.sflag [#allocation4], %s693
        %s695 = sand.u32 %s220, 1
        %s696 = smul.addr %s695, 168
        %s697 = scalar_lea.vmem [#allocation13], %s696
        // Predicated region
        $region73: #{tpu_custom_call.1} parent=43 // pred_check
          %p698 = pneg %p230
        $region74: #{tpu_custom_call.1} parent=43 // pred_check_branch
          %700 = sbr.rel (%p698) target = $region76
        $region75: #{tpu_custom_call.1} parent=43 // pred_region
          %702 = vsyncadd %s694, 0
          %s703 = smul.addr %s36, 21
          %s704 = smul.addr %s703, 8
          %s705 = scalar_lea.hbm %s6, %s704
          %s706 = sshll.u32 %s697, 4
          %s707 = int_to_ptr.vmem [resolvable:$true] %s706
          %s708 = sshll.u32 %s705, 4
          %s709 = int_to_ptr.hbm [resolvable:$true] %s708
          %714 = dma.vmem_to_hbm [thread:$0]  %s707, 2688, %s709, %s694, 128, 128, 8
        $region76: #{tpu_custom_call.1} parent=43 // pred_fallthru
          _
      $region44: #{tpu_custom_call.1} parent=5 // pred_fallthru
        _
      %p715 = scmp.le.s32.totalorder 2, %s27
      // Predicated region
      $region77: #{tpu_custom_call.1} parent=5 // pred_check
        %p716 = pneg %p715
      $region78: #{tpu_custom_call.1} parent=5 // pred_check_branch
        %718 = sbr.rel (%p716) target = $region80
      $region79: #{tpu_custom_call.1} parent=5 // pred_region
        %s719 = ssub.s32 %s27, 2
        // Predicated region
        $region81: #{tpu_custom_call.1} parent=79 // pred_check
          %p720 = pneg %p236
        $region82: #{tpu_custom_call.1} parent=79 // pred_check_branch
          %722 = sbr.rel (%p720) target = $region84
        $region83: #{tpu_custom_call.1} parent=79 // pred_region
          %s723 = sand.u32 %s221, 1
          %s724 = scalar_lea.sflag [#allocation4], %s723
          %s725 = sand.u32 %s221, 1
          %s726 = smul.addr %s725, 168
          %s727 = scalar_lea.vmem [#allocation13], %s726
          %729 = dma.done %s724, 2688
        $region84: #{tpu_custom_call.1} parent=79 // pred_fallthru
          _
      $region80: #{tpu_custom_call.1} parent=5 // pred_fallthru
        _
    $region6: #{tpu_custom_call.1} parent=1 // loop_footer
      %s31 = sadd.s32 1, %s27
    $region7: #{tpu_custom_call.1} parent=1 // loop_footer_branch
      %26 = sbr.rel target = $region3
    $region8: #{tpu_custom_call.1} parent=1 // loop_exit
      _
    %730 = vsyncpa [#allocation3], 1
    %s731 = scalar_lea.sflag [#allocation3], 1
    %732 = vsyncpa %s731, 1
    %733 = vsyncpa [#allocation6], 1
    %s734 = scalar_lea.sflag [#allocation6], 1
    %735 = vsyncpa %s734, 1
    %736 = vsyncpa [#allocation9], 1
    %s737 = scalar_lea.sflag [#allocation9], 1
    %738 = vsyncpa %s737, 1
    %739 = vsyncpa [#allocation12], 1
    %s740 = scalar_lea.sflag [#allocation12], 1
    %741 = vsyncpa %s740, 1
    %742 = vsyncpa [#allocation4], 1
    %s743 = scalar_lea.sflag [#allocation4], 1
    %744 = vsyncpa %s743, 1

</llo_original>
